<compile_context>
chip_gen: v7x
topology: tpu7x:2x2x1
jax: 0.10.0
libtpu: 0.0.40
codegen_flags: <defaults>
</compile_context>

<pallas_src>
import jax
import jax.numpy as jnp
from jax.experimental import pallas as pl
from jax.experimental.pallas import tpu as pltpu


def _round_up(x, m):
    return (x + m - 1) // m * m


def _cdiv(a, b):
    return (a + b - 1) // b


def _align_rows(tm, n):
    """Row-tile size: <= row extent, multiple of 128 (>=128), else 16, else 8."""
    tm = max(8, min(tm, _round_up(n, 8)))
    if tm >= 128:
        return tm // 128 * 128
    if tm >= 16:
        return tm // 16 * 16
    return tm // 8 * 8


def _resident_spec(block_shape, index_map, single_buffer):
    """BlockSpec for a grid-invariant operand (constant index_map).

    Such operands are DMA'd once, so a single VMEM buffer suffices; default
    double-buffering would allocate two copies of the resident X / W / support.
    """
    if single_buffer:
        try:
            return pl.BlockSpec(block_shape, index_map,
                                pipeline_mode=pl.Buffered(1))
        except Exception:  # older jax without pipeline_mode on BlockSpec
            pass
    return pl.BlockSpec(block_shape, index_map)


def _make_support_kernel(compute_dtype, has_bias):
    # out_tile = A_tile @ support (+ bias); support = X @ W precomputed in XLA.
    if has_bias:
        def kernel(a_ref, s_ref, b_ref, o_ref):
            acc = jnp.dot(a_ref[...].astype(compute_dtype), s_ref[...],
                          preferred_element_type=jnp.float32)
            o_ref[...] = (acc + b_ref[...]).astype(o_ref.dtype)
    else:
        def kernel(a_ref, s_ref, o_ref):
            acc = jnp.dot(a_ref[...].astype(compute_dtype), s_ref[...],
                          preferred_element_type=jnp.float32)
            o_ref[...] = acc.astype(o_ref.dtype)
    return kernel


def _make_fused_kernel(compute_dtype, has_bias):
    # out_tile = (A_tile @ X) @ W (+ bias); X and W resident in VMEM.
    if has_bias:
        def kernel(a_ref, x_ref, w_ref, b_ref, o_ref):
            tmp = jnp.dot(a_ref[...].astype(compute_dtype), x_ref[...],
                          preferred_element_type=jnp.float32)
            acc = jnp.dot(tmp.astype(compute_dtype), w_ref[...],
                          preferred_element_type=jnp.float32)
            o_ref[...] = (acc + b_ref[...]).astype(o_ref.dtype)
    else:
        def kernel(a_ref, x_ref, w_ref, o_ref):
            tmp = jnp.dot(a_ref[...].astype(compute_dtype), x_ref[...],
                          preferred_element_type=jnp.float32)
            acc = jnp.dot(tmp.astype(compute_dtype), w_ref[...],
                          preferred_element_type=jnp.float32)
            o_ref[...] = acc.astype(o_ref.dtype)
    return kernel


def graph_convolution(adjacency, input_feature, weight, bias=None, *,
                      tm=512, compute_dtype=jnp.bfloat16,
                      out_dtype=jnp.float32):
    """Forward pass of the GCN GraphConvolution layer.

    adjacency:     [N, N]  dense (row-)normalized adjacency, streamed as-is
                   (pass it pre-cast to bf16 to halve the dominant HBM stream).
    input_feature: [N, in_dim]
    weight:        [in_dim, out_dim]
    bias:          [out_dim] or None
    returns:       [N, out_dim] in out_dtype (f32 default; pass bf16 when the
                   consumer is the next bf16 layer to halve writeback bytes).

    compute_dtype=bfloat16 is a perf/numerics tradeoff (f32 MXU accumulation
    but bf16-quantized operands over a length-N reduction); use jnp.float32
    for exact-ish numerics.
    """
    n = adjacency.shape[0]
    in_dim, out_dim = weight.shape
    assert adjacency.shape == (n, n)
    assert input_feature.shape == (n, in_dim)

    x = input_feature.astype(compute_dtype)
    w = weight.astype(compute_dtype)

    # Lane-dense output: pad only W columns / bias / the output (never A).
    out_dim_p = _round_up(out_dim, 128)
    if out_dim_p != out_dim:
        w = jnp.pad(w, ((0, 0), (0, out_dim_p - out_dim)))

    bias_p = None
    if bias is not None:
        bias_p = bias.astype(jnp.float32).reshape(1, out_dim)
        if out_dim_p != out_dim:
            bias_p = jnp.pad(bias_p, ((0, 0), (0, out_dim_p - out_dim)))

    # Matmul-order selection: the N^2-scale matmul contracts against the
    # narrower of in_dim / out_dim_p (typical first GCN layers: in_dim >> out).
    use_support = in_dim > out_dim_p
    if use_support:
        support = jnp.dot(x, w, preferred_element_type=jnp.float32)
        support = support.astype(compute_dtype)

    # ---- Generation-aware tile / VMEM sizing ----
    try:
        vmem_cap = int(pltpu.get_tpu_info().vmem_capacity_bytes)
    except Exception:
        vmem_cap = 64 * 1024 * 1024  # conservative (v7x per-TensorCore)

    cbytes = jnp.dtype(compute_dtype).itemsize
    a_bytes = jnp.dtype(adjacency.dtype).itemsize
    o_bytes = jnp.dtype(out_dtype).itemsize
    bias_bytes = out_dim_p * 4 if bias is not None else 0

    if use_support:
        resident = n * out_dim_p * cbytes + bias_bytes
        per_row = 2 * n * a_bytes + 2 * out_dim_p * o_bytes + out_dim_p * 4
    else:
        resident = (n * in_dim + in_dim * out_dim_p) * cbytes + bias_bytes
        per_row = (2 * n * a_bytes + 2 * out_dim_p * o_bytes
                   + (in_dim + out_dim_p) * 4)

    budget = int(0.8 * vmem_cap) - resident
    # TODO(synk): budget <= 0 means the resident operands alone exceed VMEM —
    # needs the K-tiled / out_dim-tiled grid (see module TODO).
    tm_cap = max(8, budget // per_row) if budget > 0 else 8
    tm = _align_rows(min(tm, tm_cap), n)

    # Keep >= 2 row-grid steps so the "parallel" axis can shard across both
    # TensorCores on v7x (harmless on single-TC v5e/v6e).
    if _cdiv(n, tm) < 2 and n > 8:
        tm = min(tm, _round_up(_cdiv(n, 2), 8))

    grid = (_cdiv(n, tm),)

    est = resident + tm * per_row + (1 << 20)
    vmem_limit = max(int(1.25 * est), 32 * 1024 * 1024)
    vmem_limit = min(vmem_limit, int(0.9 * vmem_cap))
    vmem_limit = max(vmem_limit, est)

    if use_support:
        kernel = _make_support_kernel(compute_dtype, bias is not None)
        data_args = [adjacency, support]
        resident_blocks = [((n, out_dim_p), lambda i: (0, 0))]
    else:
        kernel = _make_fused_kernel(compute_dtype, bias is not None)
        data_args = [adjacency, x, w]
        resident_blocks = [((n, in_dim), lambda i: (0, 0)),
                           ((in_dim, out_dim_p), lambda i: (0, 0))]
    if bias is not None:
        data_args.append(bias_p)
        resident_blocks.append(((1, out_dim_p), lambda i: (0, 0)))

    def _run(single_buffer):
        in_specs = [pl.BlockSpec((tm, n), lambda i: (i, 0))]  # streamed A tiles
        in_specs += [_resident_spec(shp, imap, single_buffer)
                     for shp, imap in resident_blocks]
        return pl.pallas_call(
            kernel,
            out_shape=jax.ShapeDtypeStruct((n, out_dim_p), out_dtype),
            grid_spec=pltpu.PrefetchScalarGridSpec(
                num_scalar_prefetch=0,
                grid=grid,
                in_specs=in_specs,
                out_specs=pl.BlockSpec((tm, out_dim_p), lambda i: (i, 0)),
            ),
            compiler_params=pltpu.CompilerParams(
                dimension_semantics=("parallel",),
                vmem_limit_bytes=vmem_limit,
            ),
        )(*data_args)

    try:
        out = _run(single_buffer=True)
    except Exception:
        # pl.Buffered(1) pipeline_mode unsupported here — use default buffering.
        out = _run(single_buffer=False)

    return out[:, :out_dim] if out_dim_p != out_dim else out


def init_params(key, input_dim, output_dim, use_bias=True):
    """Matches torch init.kaiming_uniform_(weight) defaults + zeros bias.

    torch kaiming_uniform_ (a=0, leaky_relu, mode='fan_in'): gain = sqrt(2),
    fan_in = weight.size(1) = output_dim, bound = sqrt(3)*gain/sqrt(fan_in)
           = sqrt(6 / output_dim).
    """
    bound = jnp.sqrt(6.0 / output_dim)
    weight = jax.random.uniform(
        key, (input_dim, output_dim), jnp.float32, minval=-bound, maxval=bound
    )
    bias = jnp.zeros((output_dim,), jnp.float32) if use_bias else None
    return weight, bias


if __name__ == "__main__":
    key = jax.random.PRNGKey(0)
    keys = jax.random.split(key, 9)

    # ---- Test 1: fused (A@X)@W path, bf16 compute, with bias ----
    N1, DIN1, DOUT1 = 128, 64, 128
    adj1 = jax.random.uniform(keys[0], (N1, N1), jnp.float32)
    adj1 = adj1 / jnp.sum(adj1, axis=-1, keepdims=True)
    x1 = jax.random.normal(keys[1], (N1, DIN1), jnp.float32)
    w1, b1 = init_params(keys[2], DIN1, DOUT1, use_bias=True)

    out1 = jax.block_until_ready(graph_convolution(adj1, x1, w1, b1))
    ref1 = adj1 @ (x1 @ w1) + b1[None, :]
    assert out1.shape == (N1, DOUT1)
    assert jnp.allclose(out1, ref1, atol=5e-2, rtol=5e-2), \
        "bf16 fused path mismatch vs reference"

    # ---- Test 2: f32 compute, no bias, ragged N + lane-padded out_dim ----
    N2, DIN2, DOUT2 = 100, 32, 64
    adj2 = jax.random.uniform(keys[3], (N2, N2), jnp.float32)
    adj2 = adj2 / jnp.sum(adj2, axis=-1, keepdims=True)
    x2 = jax.random.normal(keys[4], (N2, DIN2), jnp.float32)
    w2, _ = init_params(keys[5], DIN2, DOUT2, use_bias=False)

    out2 = jax.block_until_ready(
        graph_convolution(adj2, x2, w2, None, compute_dtype=jnp.float32))
    ref2 = adj2 @ (x2 @ w2)
    assert out2.shape == (N2, DOUT2)
    assert jnp.allclose(out2, ref2, atol=2e-3, rtol=2e-3), \
        "f32 fused path mismatch vs reference"

    # ---- Test 3: support path (in_dim > out_dim), bf16, with bias ----
    N3, DIN3, DOUT3 = 96, 256, 32
    adj3 = jax.random.uniform(keys[6], (N3, N3), jnp.float32)
    adj3 = adj3 / jnp.sum(adj3, axis=-1, keepdims=True)
    x3 = jax.random.normal(keys[7], (N3, DIN3), jnp.float32)
    w3, b3 = init_params(keys[8], DIN3, DOUT3, use_bias=True)

    out3 = jax.block_until_ready(graph_convolution(adj3, x3, w3, b3))
    ref3 = adj3 @ (x3 @ w3) + b3[None, :]
    assert out3.shape == (N3, DOUT3)
    assert jnp.allclose(out3, ref3, atol=5e-2, rtol=5e-2), \
        "bf16 support path mismatch vs reference"

    print("KERNEL_OK")
</pallas_src>

<mosaic_0001>
module attributes {stable_mosaic.version = 11 : i64} {
  func.func @kernel(%arg0: i32, %arg1: memref<64x128xf32, #tpu.memory_space<vmem>>, %arg2: memref<128x64xbf16, #tpu.memory_space<vmem>>, %arg3: memref<64x128xbf16, #tpu.memory_space<vmem>>, %arg4: memref<1x128xf32, #tpu.memory_space<vmem>>, %arg5: memref<64x128xf32, #tpu.memory_space<vmem>>) attributes {dimension_semantics = [#tpu.dimension_semantics<parallel>], iteration_bounds = array<i64: 2>, scalar_prefetch = 0 : i64, scratch_operands = 0 : i64, tpu.core_type = #tpu.core_type<tc>, window_params = [{transform_indices = @transform_0, window_bounds = array<i64: 64, 128>}, {pipeline_mode = #tpu.pipeline_mode<synchronous>, transform_indices = @transform_1, window_bounds = array<i64: 128, 64>}, {pipeline_mode = #tpu.pipeline_mode<synchronous>, transform_indices = @transform_2, window_bounds = array<i64: 64, 128>}, {pipeline_mode = #tpu.pipeline_mode<synchronous>, transform_indices = @transform_3, window_bounds = array<i64: 1, 128>}, {transform_indices = @transform_4, window_bounds = array<i64: 64, 128>}]} {
    %c0 = arith.constant 0 : index
    %c0_0 = arith.constant 0 : index
    %0 = vector.load %arg1[%c0, %c0_0] : memref<64x128xf32, #tpu.memory_space<vmem>>, vector<64x128xf32>
    %1 = arith.truncf %0 : vector<64x128xf32> to vector<64x128xbf16>
    %c0_1 = arith.constant 0 : index
    %c0_2 = arith.constant 0 : index
    %2 = vector.load %arg2[%c0_1, %c0_2] : memref<128x64xbf16, #tpu.memory_space<vmem>>, vector<128x64xbf16>
    %cst = arith.constant dense<0.000000e+00> : vector<64x64xf32>
    %3 = tpu.matmul %1, %2, %cst {dimension_numbers = #tpu.dot_dimension_numbers<[1], [0], [0], [1], [0, 0, 1, 1], [], []>} : vector<64x128xbf16>, vector<128x64xbf16>, vector<64x64xf32> -> vector<64x64xf32>
    %4 = arith.truncf %3 : vector<64x64xf32> to vector<64x64xbf16>
    %c0_3 = arith.constant 0 : index
    %c0_4 = arith.constant 0 : index
    %5 = vector.load %arg3[%c0_3, %c0_4] : memref<64x128xbf16, #tpu.memory_space<vmem>>, vector<64x128xbf16>
    %cst_5 = arith.constant dense<0.000000e+00> : vector<64x128xf32>
    %6 = tpu.matmul %4, %5, %cst_5 {dimension_numbers = #tpu.dot_dimension_numbers<[1], [0], [0], [1], [0, 0, 1, 1], [], []>} : vector<64x64xbf16>, vector<64x128xbf16>, vector<64x128xf32> -> vector<64x128xf32>
    %c0_6 = arith.constant 0 : index
    %c0_7 = arith.constant 0 : index
    %7 = vector.load %arg4[%c0_6, %c0_7] : memref<1x128xf32, #tpu.memory_space<vmem>>, vector<1x128xf32>
    %8 = vector.broadcast %7 : vector<1x128xf32> to vector<64x128xf32>
    %9 = arith.addf %6, %8 : vector<64x128xf32>
    %c0_8 = arith.constant 0 : index
    %c0_9 = arith.constant 0 : index
    %10 = vector.load %arg5[%c0_8, %c0_9] : memref<64x128xf32, #tpu.memory_space<vmem>>, vector<64x128xf32>
    tpu.vector_store %arg5[%c0_8, %c0_9], %9 {strides = array<i32>} : memref<64x128xf32, #tpu.memory_space<vmem>>, vector<64x128xf32>,
    return
  }
  func.func @transform_0(%arg0: i32) -> (i32, i32) {
    %c0_i32 = arith.constant 0 : i32
    %c0_i32_0 = arith.constant 0 : i32
    return %arg0, %c0_i32 : i32, i32
  }
  func.func @transform_1(%arg0: i32) -> (i32, i32) {
    %c0_i32 = arith.constant 0 : i32
    %c0_i32_0 = arith.constant 0 : i32
    %c0_i32_1 = arith.constant 0 : i32
    return %c0_i32, %c0_i32_0 : i32, i32
  }
  func.func @transform_2(%arg0: i32) -> (i32, i32) {
    %c0_i32 = arith.constant 0 : i32
    %c0_i32_0 = arith.constant 0 : i32
    %c0_i32_1 = arith.constant 0 : i32
    return %c0_i32, %c0_i32_0 : i32, i32
  }
  func.func @transform_3(%arg0: i32) -> (i32, i32) {
    %c0_i32 = arith.constant 0 : i32
    %c0_i32_0 = arith.constant 0 : i32
    %c0_i32_1 = arith.constant 0 : i32
    return %c0_i32, %c0_i32_0 : i32, i32
  }
  func.func @transform_4(%arg0: i32) -> (i32, i32) {
    %c0_i32 = arith.constant 0 : i32
    %c0_i32_0 = arith.constant 0 : i32
    return %arg0, %c0_i32 : i32, i32
  }
}

module attributes {stable_mosaic.version = 11 : i64} {
  func.func @kernel(%arg0: i32, %arg1: memref<64x128xf32, #tpu.memory_space<vmem>>, %arg2: memref<128x64xbf16, #tpu.memory_space<vmem>>, %arg3: memref<64x128xbf16, #tpu.memory_space<vmem>>, %arg4: memref<1x128xf32, #tpu.memory_space<vmem>>, %arg5: memref<64x128xf32, #tpu.memory_space<vmem>>) attributes {dimension_semantics = [#tpu.dimension_semantics<parallel>], iteration_bounds = array<i64: 2>, scalar_prefetch = 0 : i64, scratch_operands = 0 : i64, tpu.core_type = #tpu.core_type<tc>, window_params = [{transform_indices = @transform_0, window_bounds = array<i64: 64, 128>}, {pipeline_mode = #tpu.pipeline_mode<synchronous>, transform_indices = @transform_1, window_bounds = array<i64: 128, 64>}, {pipeline_mode = #tpu.pipeline_mode<synchronous>, transform_indices = @transform_2, window_bounds = array<i64: 64, 128>}, {pipeline_mode = #tpu.pipeline_mode<synchronous>, transform_indices = @transform_3, window_bounds = array<i64: 1, 128>}, {transform_indices = @transform_4, window_bounds = array<i64: 64, 128>}]} {
    %c0 = arith.constant 0 : index
    %c0_0 = arith.constant 0 : index
    %0 = vector.load %arg1[%c0, %c0_0] : memref<64x128xf32, #tpu.memory_space<vmem>>, vector<64x128xf32>
    %1 = arith.truncf %0 : vector<64x128xf32> to vector<64x128xbf16>
    %c0_1 = arith.constant 0 : index
    %c0_2 = arith.constant 0 : index
    %2 = vector.load %arg2[%c0_1, %c0_2] : memref<128x64xbf16, #tpu.memory_space<vmem>>, vector<128x64xbf16>
    %cst = arith.constant dense<0.000000e+00> : vector<64x64xf32>
    %3 = tpu.matmul %1, %2, %cst {dimension_numbers = #tpu.dot_dimension_numbers<[1], [0], [0], [1], [0, 0, 1, 1], [], []>} : vector<64x128xbf16>, vector<128x64xbf16>, vector<64x64xf32> -> vector<64x64xf32>
    %4 = arith.truncf %3 : vector<64x64xf32> to vector<64x64xbf16>
    %c0_3 = arith.constant 0 : index
    %c0_4 = arith.constant 0 : index
    %5 = vector.load %arg3[%c0_3, %c0_4] : memref<64x128xbf16, #tpu.memory_space<vmem>>, vector<64x128xbf16>
    %cst_5 = arith.constant dense<0.000000e+00> : vector<64x128xf32>
    %6 = tpu.matmul %4, %5, %cst_5 {dimension_numbers = #tpu.dot_dimension_numbers<[1], [0], [0], [1], [0, 0, 1, 1], [], []>} : vector<64x64xbf16>, vector<64x128xbf16>, vector<64x128xf32> -> vector<64x128xf32>
    %c0_6 = arith.constant 0 : index
    %c0_7 = arith.constant 0 : index
    %7 = vector.load %arg4[%c0_6, %c0_7] : memref<1x128xf32, #tpu.memory_space<vmem>>, vector<1x128xf32>
    %8 = vector.broadcast %7 : vector<1x128xf32> to vector<64x128xf32>
    %9 = arith.addf %6, %8 : vector<64x128xf32>
    %c0_8 = arith.constant 0 : index
    %c0_9 = arith.constant 0 : index
    %10 = vector.load %arg5[%c0_8, %c0_9] : memref<64x128xf32, #tpu.memory_space<vmem>>, vector<64x128xf32>
    tpu.vector_store %arg5[%c0_8, %c0_9], %9 {strides = array<i32>} : memref<64x128xf32, #tpu.memory_space<vmem>>, vector<64x128xf32>,
    return
  }
  func.func @transform_0(%arg0: i32) -> (i32, i32) {
    %c0_i32 = arith.constant 0 : i32
    %c0_i32_0 = arith.constant 0 : i32
    return %arg0, %c0_i32 : i32, i32
  }
  func.func @transform_1(%arg0: i32) -> (i32, i32) {
    %c0_i32 = arith.constant 0 : i32
    %c0_i32_0 = arith.constant 0 : i32
    %c0_i32_1 = arith.constant 0 : i32
    return %c0_i32, %c0_i32_0 : i32, i32
  }
  func.func @transform_2(%arg0: i32) -> (i32, i32) {
    %c0_i32 = arith.constant 0 : i32
    %c0_i32_0 = arith.constant 0 : i32
    %c0_i32_1 = arith.constant 0 : i32
    return %c0_i32, %c0_i32_0 : i32, i32
  }
  func.func @transform_3(%arg0: i32) -> (i32, i32) {
    %c0_i32 = arith.constant 0 : i32
    %c0_i32_0 = arith.constant 0 : i32
    %c0_i32_1 = arith.constant 0 : i32
    return %c0_i32, %c0_i32_0 : i32, i32
  }
  func.func @transform_4(%arg0: i32) -> (i32, i32) {
    %c0_i32 = arith.constant 0 : i32
    %c0_i32_0 = arith.constant 0 : i32
    return %arg0, %c0_i32 : i32, i32
  }
}

</mosaic_0001>

<llo_original>
// kernel: tpu_custom_call.1
$region0: #{tpu_custom_call.1}
  #allocation0 [shape = 'u32[]', space=smem, size = 0x4, offset = 0x4, fixed_abs, tag = 'smem constant byte address 0x4 - core index']
  #allocation1 [shape = 'u32[144,128]{1,0:T(1,128)}', space=vmem, size = 0x12000, scoped, tag = 'internal scratch']
  %s0 = inlined_call_operand.hbm [shape: f32[128,128], index: 0, kind: input, shape index: {}]
  %s1 = inlined_call_operand.vmem [shape: bf16[128,64], index: 1, kind: input, shape index: {}]
  %s2 = inlined_call_operand.vmem [shape: bf16[64,128], index: 2, kind: input, shape index: {}]
  %s3 = inlined_call_operand.vmem [shape: f32[1,128], index: 3, kind: input, shape index: {}]
  %s4 = inlined_call_operand.hbm [shape: f32[128,128], index: 4, kind: output, shape index: {}]
  %s5 = sld [smem:[#allocation0]]
  $region53: #{tpu_custom_call.1} parent=0
    _
  %s7 = ssub.s32 1, %s5
  %s8 = scalar_select 0, %s7, %s5
  $region1: #{tpu_custom_call.1} parent=0
    #allocation2 [shape = 'u8[65536]{0}', space=vmem, size = 0x10000, scoped, tag = 'input window, operand 0']
    #allocation3 [shape = 's32[2]{0}', space=sflag, size = 0x8, scoped, tag = 'scoped memory for tpu_custom_call.1']
    #allocation4 [shape = 's32[2]{0}', space=sflag, size = 0x8, scoped, tag = 'scoped memory for tpu_custom_call.1']
    #allocation5 [shape = 'u8[65536]{0}', space=vmem, size = 0x10000, scoped, tag = 'output window, operand 0']
    %9 = vsyncpa [#allocation3], 0
    %s10 = scalar_lea.sflag [#allocation3], 1
    %11 = vsyncpa %s10, 0
    %12 = vsyncpa [#allocation4], 0
    %s13 = scalar_lea.sflag [#allocation4], 1
    %14 = vsyncpa %s13, 0
    loop: start=0, step=1, limit=4
    $region2: #{tpu_custom_call.1} parent=1 // loop_pre_header
      _
    $region3: #{tpu_custom_call.1} parent=1 // loop_header
      %s16 = sphi 0, %s20
      %p17 = scmp.ge.s32.totalorder %s16, 4
      %s26 = sphi 0, %s28
      %s29 = sphi 0, %s26
      %s30 = sphi 0, %s29
      %s46 = sphi 0, %s30
      %s50 = sphi 0, %s50
      %s52 = sphi 0, %s50
      %s53 = sphi 0, %s52
      %s67 = sphi 0, %s53
      %s71 = sphi 0, %s71
      %s73 = sphi 0, %s71
      %s74 = sphi 0, %s73
      %s88 = sphi 0, %s74
      %s92 = sphi 0, %s92
      %s94 = sphi 0, %s92
      %s95 = sphi 0, %s94
      %s109 = sphi 0, %s95
      %s115 = sphi 0, %s117
      %s118 = sphi 0, %s115
      %s119 = sphi 0, %s118
      %s135 = sphi 0, %s119
    $region4: #{tpu_custom_call.1} parent=1 // loop_header_branch
      %19 = sbr.rel (%p17) target = $region8
    $region5: #{tpu_custom_call.1} parent=1 // loop_body
      %s21 = ssub.s32 %s16, 1
      %s22 = ssub.s32 %s16, 2
      %s23 = sadd.s32 %s16, 1
      %s24 = ssub.s32 %s16, %s23
      %p25 = scmp.eq.s32.totalorder %s24, 0
      %s27 = sadd.s32 %s26, 1
      %s28 = scalar_select %p25, %s26, %s27
      %p31 = pneg %p25
      %p32 = scmp.eq.s32.totalorder %s16, 1
      %p33 = por %p31, %p32
      %p34 = scmp.ne.s32.totalorder %s26, %s29
      %p35 = scmp.eq.s32.totalorder %s16, 0
      %p36 = por %p34, %p35
      %p37 = scmp.ne.s32.totalorder %s26, %s29
      %p38 = scmp.eq.s32.totalorder %s21, 1
      %p39 = por %p37, %p38
      %p40 = scmp.ne.s32.totalorder %s29, %s30
      %p41 = scmp.eq.s32.totalorder %s21, 0
      %p42 = por %p40, %p41
      %p43 = scmp.ne.s32.totalorder %s29, %s30
      %p44 = scmp.eq.s32.totalorder %s22, 1
      %p45 = por %p43, %p44
      %p47 = scmp.ne.s32.totalorder %s30, %s46
      %p48 = scmp.eq.s32.totalorder %s22, 0
      %p49 = por %p47, %p48
      %s51 = sadd.s32 %s50, 1
      %p54 = scmp.eq.s32.totalorder %s16, 1
      %p55 = scmp.ne.s32.totalorder %s50, %s52
      %p56 = scmp.eq.s32.totalorder %s16, 0
      %p57 = por %p55, %p56
      %p58 = scmp.ne.s32.totalorder %s50, %s52
      %p59 = scmp.eq.s32.totalorder %s21, 1
      %p60 = por %p58, %p59
      %p61 = scmp.ne.s32.totalorder %s52, %s53
      %p62 = scmp.eq.s32.totalorder %s21, 0
      %p63 = por %p61, %p62
      %p64 = scmp.ne.s32.totalorder %s52, %s53
      %p65 = scmp.eq.s32.totalorder %s22, 1
      %p66 = por %p64, %p65
      %p68 = scmp.ne.s32.totalorder %s53, %s67
      %p69 = scmp.eq.s32.totalorder %s22, 0
      %p70 = por %p68, %p69
      %s72 = sadd.s32 %s71, 1
      %p75 = scmp.eq.s32.totalorder %s16, 1
      %p76 = scmp.ne.s32.totalorder %s71, %s73
      %p77 = scmp.eq.s32.totalorder %s16, 0
      %p78 = por %p76, %p77
      %p79 = scmp.ne.s32.totalorder %s71, %s73
      %p80 = scmp.eq.s32.totalorder %s21, 1
      %p81 = por %p79, %p80
      %p82 = scmp.ne.s32.totalorder %s73, %s74
      %p83 = scmp.eq.s32.totalorder %s21, 0
      %p84 = por %p82, %p83
      %p85 = scmp.ne.s32.totalorder %s73, %s74
      %p86 = scmp.eq.s32.totalorder %s22, 1
      %p87 = por %p85, %p86
      %p89 = scmp.ne.s32.totalorder %s74, %s88
      %p90 = scmp.eq.s32.totalorder %s22, 0
      %p91 = por %p89, %p90
      %s93 = sadd.s32 %s92, 1
      %p96 = scmp.eq.s32.totalorder %s16, 1
      %p97 = scmp.ne.s32.totalorder %s92, %s94
      %p98 = scmp.eq.s32.totalorder %s16, 0
      %p99 = por %p97, %p98
      %p100 = scmp.ne.s32.totalorder %s92, %s94
      %p101 = scmp.eq.s32.totalorder %s21, 1
      %p102 = por %p100, %p101
      %p103 = scmp.ne.s32.totalorder %s94, %s95
      %p104 = scmp.eq.s32.totalorder %s21, 0
      %p105 = por %p103, %p104
      %p106 = scmp.ne.s32.totalorder %s94, %s95
      %p107 = scmp.eq.s32.totalorder %s22, 1
      %p108 = por %p106, %p107
      %p110 = scmp.ne.s32.totalorder %s95, %s109
      %p111 = scmp.eq.s32.totalorder %s22, 0
      %p112 = por %p110, %p111
      %s113 = ssub.s32 %s16, %s23
      %p114 = scmp.eq.s32.totalorder %s113, 0
      %s116 = sadd.s32 %s115, 1
      %s117 = scalar_select %p114, %s115, %s116
      %p120 = pneg %p114
      %p121 = scmp.eq.s32.totalorder %s16, 1
      %p122 = por %p120, %p121
      %p123 = scmp.ne.s32.totalorder %s115, %s118
      %p124 = scmp.eq.s32.totalorder %s16, 0
      %p125 = por %p123, %p124
      %p126 = scmp.ne.s32.totalorder %s115, %s118
      %p127 = scmp.eq.s32.totalorder %s21, 1
      %p128 = por %p126, %p127
      %p129 = scmp.ne.s32.totalorder %s118, %s119
      %p130 = scmp.eq.s32.totalorder %s21, 0
      %p131 = por %p129, %p130
      %p132 = scmp.ne.s32.totalorder %s118, %s119
      %p133 = scmp.eq.s32.totalorder %s22, 1
      %p134 = por %p132, %p133
      %p136 = scmp.ne.s32.totalorder %s119, %s135
      %p137 = scmp.eq.s32.totalorder %s22, 0
      %p138 = por %p136, %p137
      %p139 = scmp.le.s32.totalorder 1, %s16
      %p140 = scmp.lt.s32.totalorder %s16, 3
      %p141 = pnand %p139, %p140
      %p142 = pneg %p141
      // Predicated region
      $region9: #{tpu_custom_call.1} parent=5 // pred_check
        _
      $region10: #{tpu_custom_call.1} parent=5 // pred_check_branch
        %144 = sbr.rel (%p141) target = $region12
      $region11: #{tpu_custom_call.1} parent=5 // pred_region
        %s145 = ssub.s32 %s16, 1
        // Predicated region
        $region13: #{tpu_custom_call.1} parent=11 // pred_check
          %p146 = pneg %p63
        $region14: #{tpu_custom_call.1} parent=11 // pred_check_branch
          %148 = sbr.rel (%p146) target = $region16
        $region15: #{tpu_custom_call.1} parent=11 // pred_region
          _
        $region16: #{tpu_custom_call.1} parent=11 // pred_fallthru
          _
        // Predicated region
        $region17: #{tpu_custom_call.1} parent=11 // pred_check
          %p149 = pneg %p84
        $region18: #{tpu_custom_call.1} parent=11 // pred_check_branch
          %151 = sbr.rel (%p149) target = $region20
        $region19: #{tpu_custom_call.1} parent=11 // pred_region
          _
        $region20: #{tpu_custom_call.1} parent=11 // pred_fallthru
          _
        // Predicated region
        $region21: #{tpu_custom_call.1} parent=11 // pred_check
          %p152 = pneg %p105
        $region22: #{tpu_custom_call.1} parent=11 // pred_check_branch
          %154 = sbr.rel (%p152) target = $region24
        $region23: #{tpu_custom_call.1} parent=11 // pred_region
          _
        $region24: #{tpu_custom_call.1} parent=11 // pred_fallthru
          _
      $region12: #{tpu_custom_call.1} parent=5 // pred_fallthru
        _
      %p155 = scmp.lt.s32.totalorder %s16, 2
      // Predicated region
      $region25: #{tpu_custom_call.1} parent=5 // pred_check
        %p156 = pneg %p155
      $region26: #{tpu_custom_call.1} parent=5 // pred_check_branch
        %158 = sbr.rel (%p156) target = $region28
      $region27: #{tpu_custom_call.1} parent=5 // pred_region
        // Predicated region
        $region29: #{tpu_custom_call.1} parent=27 // pred_check
          %p159 = pneg %p36
        $region30: #{tpu_custom_call.1} parent=27 // pred_check_branch
          %161 = sbr.rel (%p159) target = $region32
        $region31: #{tpu_custom_call.1} parent=27 // pred_region
          %s162 = sand.u32 %s26, 1
          %s163 = scalar_lea.sflag [#allocation3], %s162
          %s164 = sand.u32 %s26, 1
          %s165 = smul.addr %s164, 64
          %s166 = scalar_lea.vmem [#allocation2], %s165
          %s167 = smul.u32 8, %s16
          %s169 = ssub.s32 1024, 1024
          %170 = vsyncadd %s163, %s169
          %s171 = smul.addr %s167, 128
          %s172 = scalar_lea.hbm %s0, %s171
          %s173 = sshll.u32 %s166, 4
          %s174 = int_to_ptr.vmem [resolvable:$true] %s173
          %179 = dma.hbm_to_vmem [thread:$0]  %s172, 1024, %s174, %s163, 128, 128, 8
        $region32: #{tpu_custom_call.1} parent=27 // pred_fallthru
          _
      $region28: #{tpu_custom_call.1} parent=5 // pred_fallthru
        _
      %p180 = scmp.le.s32.totalorder 1, %s16
      %p181 = scmp.lt.s32.totalorder %s16, 3
      %p182 = pnand %p180, %p181
      %p183 = pneg %p182
      // Predicated region
      $region33: #{tpu_custom_call.1} parent=5 // pred_check
        _
      $region34: #{tpu_custom_call.1} parent=5 // pred_check_branch
        %185 = sbr.rel (%p182) target = $region36
      $region35: #{tpu_custom_call.1} parent=5 // pred_region
        %s186 = ssub.s32 %s16, 1
        %s187 = sand.u32 %s29, 1
        %s188 = scalar_lea.sflag [#allocation3], %s187
        %s189 = sand.u32 %s29, 1
        %s190 = smul.addr %s189, 64
        %s191 = scalar_lea.vmem [#allocation2], %s190
        // Predicated region
        $region37: #{tpu_custom_call.1} parent=35 // pred_check
          %p192 = pneg %p42
        $region38: #{tpu_custom_call.1} parent=35 // pred_check_branch
          %194 = sbr.rel (%p192) target = $region40
        $region39: #{tpu_custom_call.1} parent=35 // pred_region
          %195 = dma.done %s188, 1024
        $region40: #{tpu_custom_call.1} parent=35 // pred_fallthru
          _
        %s196 = sand.u32 %s29, 1
        %s197 = scalar_lea.sflag [#allocation3], %s196
        %s198 = sand.u32 %s29, 1
        %s199 = smul.addr %s198, 64
        %s200 = scalar_lea.vmem [#allocation2], %s199
        %p201 = pneg %p42
        %p202 = pneg %p39
        %p203 = pneg %p63
        %p204 = pneg %p60
        %p205 = pneg %p84
        %p206 = pneg %p81
        %p207 = pneg %p105
        %p208 = pneg %p102
        %p209 = pneg %p131
        %p210 = pneg %p128
        %s211 = sand.u32 %s118, 1
        %s212 = scalar_lea.sflag [#allocation4], %s211
        %s213 = sand.u32 %s118, 1
        %s214 = smul.addr %s213, 64
        %s215 = scalar_lea.vmem [#allocation5], %s214
        %s216 = smul.u32 8, %s21
        %s217 = smul.u32 8, %s21
        %v219 = vld [vmem:[%s191] sm:$0xff]
        %v220 = vld [vmem:[%s191 + $0x8] sm:$0xff]
        %v221 = vld [vmem:[%s191 + $0x10] sm:$0xff]
        %v222 = vld [vmem:[%s191 + $0x18] sm:$0xff]
        %v223 = vld [vmem:[%s191 + $0x20] sm:$0xff]
        %v224 = vld [vmem:[%s191 + $0x28] sm:$0xff]
        %v225 = vld [vmem:[%s191 + $0x30] sm:$0xff]
        %v226 = vld [vmem:[%s191 + $0x38] sm:$0xff]
        %v227 = vpack.c.bf16 %v220, %v219
        %v228 = vpack.c.bf16 %v222, %v221
        %v229 = vpack.c.bf16 %v224, %v223
        %v230 = vpack.c.bf16 %v226, %v225
        %v231 = vld [vmem:[%s1] sm:$0xf]
        %v232 = vld [vmem:[%s1 + $0x4] sm:$0xf]
        %v233 = vld [vmem:[%s1 + $0x8] sm:$0xf]
        %v234 = vld [vmem:[%s1 + $0xc] sm:$0xf]
        %v235 = vld [vmem:[%s1 + $0x10] sm:$0xf]
        %v236 = vld [vmem:[%s1 + $0x14] sm:$0xf]
        %v237 = vld [vmem:[%s1 + $0x18] sm:$0xf]
        %v238 = vld [vmem:[%s1 + $0x1c] sm:$0xf]
        %v239 = vld [vmem:[%s1 + $0x20] sm:$0xf]
        %v240 = vld [vmem:[%s1 + $0x24] sm:$0xf]
        %v241 = vld [vmem:[%s1 + $0x28] sm:$0xf]
        %v242 = vld [vmem:[%s1 + $0x2c] sm:$0xf]
        %v243 = vld [vmem:[%s1 + $0x30] sm:$0xf]
        %v244 = vld [vmem:[%s1 + $0x34] sm:$0xf]
        %v245 = vld [vmem:[%s1 + $0x38] sm:$0xf]
        %v246 = vld [vmem:[%s1 + $0x3c] sm:$0xf]
        %v263 = vunpack.c.l.b16 %v231
        %v264 = vunpack.c.l.b16 %v232
        %v265 = vunpack.c.l.b16 %v233
        %v266 = vunpack.c.l.b16 %v234
        %v267 = vunpack.c.l.b16 %v235
        %v268 = vunpack.c.l.b16 %v236
        %v269 = vunpack.c.l.b16 %v237
        %v270 = vunpack.c.l.b16 %v238
        %v271 = vunpack.c.l.b16 %v239
        %v272 = vunpack.c.l.b16 %v240
        %v273 = vunpack.c.l.b16 %v241
        %v274 = vunpack.c.l.b16 %v242
        %v275 = vunpack.c.l.b16 %v243
        %v276 = vunpack.c.l.b16 %v244
        %v277 = vunpack.c.l.b16 %v245
        %v278 = vunpack.c.l.b16 %v246
        %v279 = vpack.c.b16 %v264, %v263
        %v280 = vpack.c.b16 %v266, %v265
        %v281 = vpack.c.b16 %v268, %v267
        %v282 = vpack.c.b16 %v270, %v269
        %v283 = vpack.c.b16 %v272, %v271
        %v284 = vpack.c.b16 %v274, %v273
        %v285 = vpack.c.b16 %v276, %v275
        %v286 = vpack.c.b16 %v278, %v277
        %295 = vmatprep.subr.bf16.mxu0 0
        %296 = vmatpush1.bf16.msra.mxu0 %v279
        %297 = vmatprep.subr.bf16.mxu0 0
        %298 = vmatpush1.bf16.msra.mxu0 %v280
        %299 = vmatprep.subr.bf16.mxu0 0
        %300 = vmatpush1.bf16.msra.mxu0 %v281
        %301 = vmatprep.subr.bf16.mxu0 0
        %302 = vmatpush1.bf16.msra.mxu0 %v282
        %303 = vmatprep.subr.bf16.mxu0 0
        %304 = vmatpush1.bf16.msra.mxu0 %v283
        %305 = vmatprep.subr.bf16.mxu0 0
        %306 = vmatpush1.bf16.msra.mxu0 %v284
        %307 = vmatprep.subr.bf16.mxu0 0
        %308 = vmatpush1.bf16.msra.mxu0 %v285
        %309 = vmatprep.subr.bf16.mxu0 0
        %310 = vmatpush1.bf16.msra.mxu0 %v286
        %311 = vmatprep.subr.bf16.mxu0 0
        %312 = vmatpush1.bf16.msra.mxu0 0
        %313 = vmatprep.subr.bf16.mxu0 0
        %314 = vmatpush1.bf16.msra.mxu0 0
        %315 = vmatprep.subr.bf16.mxu0 0
        %316 = vmatpush1.bf16.msra.mxu0 0
        %317 = vmatprep.subr.bf16.mxu0 0
        %318 = vmatpush1.bf16.msra.mxu0 0
        %319 = vmatprep.subr.bf16.mxu0 0
        %320 = vmatpush1.bf16.msra.mxu0 0
        %321 = vmatprep.subr.bf16.mxu0 0
        %322 = vmatpush1.bf16.msra.mxu0 0
        %323 = vmatprep.subr.bf16.mxu0 0
        %324 = vmatpush1.bf16.msra.mxu0 0
        %325 = vmatprep.subr.bf16.mxu0 0
        %326 = vmatpush1.bf16.msra.mxu0 0
        %327 = vmatprep.mubr.bf16.mxu0 0
        %328 = vmatmul.mubr.bf16.gmra.mrb[0].mxu0 %v227
        %v329 = vpop.f32.mrb[0].mxu0
        %v330 = vadd.f32 0.0, %v329
        %v331 = vpop.f32.mrb[0].mxu0
        %v332 = vpop.f32.mrb[0].mxu0
        %v333 = vadd.f32 0.0, %v332
        %v334 = vpop.f32.mrb[0].mxu0
        %335 = vmatprep.mubr.bf16.mxu0 0
        %336 = vmatmul.mubr.bf16.gmra.mrb[0].mxu0 %v228
        %v337 = vpop.f32.mrb[0].mxu0
        %v338 = vadd.f32 0.0, %v337
        %v339 = vpop.f32.mrb[0].mxu0
        %v340 = vpop.f32.mrb[0].mxu0
        %v341 = vadd.f32 0.0, %v340
        %v342 = vpop.f32.mrb[0].mxu0
        %343 = vmatprep.mubr.bf16.mxu0 0
        %344 = vmatmul.mubr.bf16.gmra.mrb[0].mxu0 %v229
        %v345 = vpop.f32.mrb[0].mxu0
        %v346 = vadd.f32 0.0, %v345
        %v347 = vpop.f32.mrb[0].mxu0
        %v348 = vpop.f32.mrb[0].mxu0
        %v349 = vadd.f32 0.0, %v348
        %v350 = vpop.f32.mrb[0].mxu0
        %351 = vmatprep.mubr.bf16.mxu0 0
        %352 = vmatmul.mubr.bf16.gmra.mrb[0].mxu0 %v230
        %v353 = vpop.f32.mrb[0].mxu0
        %v354 = vadd.f32 0.0, %v353
        %v355 = vpop.f32.mrb[0].mxu0
        %v356 = vpop.f32.mrb[0].mxu0
        %v357 = vadd.f32 0.0, %v356
        %v358 = vpop.f32.mrb[0].mxu0
        %359 = vdwg.mxu0
        %v360 = vpack.c.bf16 %v333, %v330
        %v361 = vpack.c.bf16 %v341, %v338
        %v362 = vpack.c.bf16 %v349, %v346
        %v363 = vpack.c.bf16 %v357, %v354
        %v364 = vld [vmem:[%s2] sm:$0xf]
        %v365 = vld [vmem:[%s2 + $0x4] sm:$0xf]
        %v366 = vld [vmem:[%s2 + $0x8] sm:$0xf]
        %v367 = vld [vmem:[%s2 + $0xc] sm:$0xf]
        %v368 = vld [vmem:[%s2 + $0x10] sm:$0xf]
        %v369 = vld [vmem:[%s2 + $0x14] sm:$0xf]
        %v370 = vld [vmem:[%s2 + $0x18] sm:$0xf]
        %v371 = vld [vmem:[%s2 + $0x1c] sm:$0xf]
        %v372 = vld [vmem:[%s3] sm:$0x1]
        %v374 = vlaneseq
        %v375 = vshrl.u32 %v374, 7
        %v376 = vsub.s32 0, %v375
        %v377 = vrot.slane %v372, %v376
        %v387 = vunpack.c.l.b16 %v364
        %v388 = vunpack.c.l.b16 %v365
        %v389 = vunpack.c.l.b16 %v366
        %v390 = vunpack.c.l.b16 %v367
        %v391 = vunpack.c.l.b16 %v368
        %v392 = vunpack.c.l.b16 %v369
        %v393 = vunpack.c.l.b16 %v370
        %v394 = vunpack.c.l.b16 %v371
        %v395 = vpack.c.b16 %v388, %v387
        %v396 = vpack.c.b16 %v390, %v389
        %v397 = vpack.c.b16 %v392, %v391
        %v398 = vpack.c.b16 %v394, %v393
        %vm403 = vcmask 523264
        %v405 = vsel %vm403, %v360, 0
        %v408 = vsel %vm403, %v361, 0
        %v411 = vsel %vm403, %v362, 0
        %v414 = vsel %vm403, %v363, 0
        %416 = vmatprep.subr.bf16.mxu0 0
        %417 = vmatpush1.bf16.msra.mxu0 %v395
        %418 = vmatprep.subr.bf16.mxu0 0
        %419 = vmatpush1.bf16.msra.mxu0 %v396
        %420 = vmatprep.subr.bf16.mxu0 0
        %421 = vmatpush1.bf16.msra.mxu0 %v397
        %422 = vmatprep.subr.bf16.mxu0 0
        %423 = vmatpush1.bf16.msra.mxu0 %v398
        %424 = vmatprep.subr.bf16.mxu0 0
        %425 = vmatpush1.bf16.msra.mxu0 0
        %426 = vmatprep.subr.bf16.mxu0 0
        %427 = vmatpush1.bf16.msra.mxu0 0
        %428 = vmatprep.subr.bf16.mxu0 0
        %429 = vmatpush1.bf16.msra.mxu0 0
        %430 = vmatprep.subr.bf16.mxu0 0
        %431 = vmatpush1.bf16.msra.mxu0 0
        %432 = vmatprep.subr.bf16.mxu0 0
        %433 = vmatpush1.bf16.msra.mxu0 0
        %434 = vmatprep.subr.bf16.mxu0 0
        %435 = vmatpush1.bf16.msra.mxu0 0
        %436 = vmatprep.subr.bf16.mxu0 0
        %437 = vmatpush1.bf16.msra.mxu0 0
        %438 = vmatprep.subr.bf16.mxu0 0
        %439 = vmatpush1.bf16.msra.mxu0 0
        %440 = vmatprep.subr.bf16.mxu0 0
        %441 = vmatpush1.bf16.msra.mxu0 0
        %442 = vmatprep.subr.bf16.mxu0 0
        %443 = vmatpush1.bf16.msra.mxu0 0
        %444 = vmatprep.subr.bf16.mxu0 0
        %445 = vmatpush1.bf16.msra.mxu0 0
        %446 = vmatprep.subr.bf16.mxu0 0
        %447 = vmatpush1.bf16.msra.mxu0 0
        %448 = vmatprep.mubr.bf16.mxu0 0
        %449 = vmatmul.mubr.bf16.gmra.mrb[0].mxu0 %v405
        %v450 = vpop.f32.mrb[0].mxu0
        %v451 = vadd.f32 %v377, %v450
        %v452 = vpop.f32.mrb[0].mxu0
        %v453 = vpop.f32.mrb[0].mxu0
        %v454 = vadd.f32 %v377, %v453
        %v455 = vpop.f32.mrb[0].mxu0
        %456 = vmatprep.mubr.bf16.mxu0 0
        %457 = vmatmul.mubr.bf16.gmra.mrb[0].mxu0 %v408
        %v458 = vpop.f32.mrb[0].mxu0
        %v459 = vadd.f32 %v377, %v458
        %v460 = vpop.f32.mrb[0].mxu0
        %v461 = vpop.f32.mrb[0].mxu0
        %v462 = vadd.f32 %v377, %v461
        %v463 = vpop.f32.mrb[0].mxu0
        %464 = vmatprep.mubr.bf16.mxu0 0
        %465 = vmatmul.mubr.bf16.gmra.mrb[0].mxu0 %v411
        %v466 = vpop.f32.mrb[0].mxu0
        %v467 = vadd.f32 %v377, %v466
        %v468 = vpop.f32.mrb[0].mxu0
        %v469 = vpop.f32.mrb[0].mxu0
        %v470 = vadd.f32 %v377, %v469
        %v471 = vpop.f32.mrb[0].mxu0
        %472 = vmatprep.mubr.bf16.mxu0 0
        %473 = vmatmul.mubr.bf16.gmra.mrb[0].mxu0 %v414
        %v474 = vpop.f32.mrb[0].mxu0
        %v475 = vadd.f32 %v377, %v474
        %v476 = vpop.f32.mrb[0].mxu0
        %v477 = vpop.f32.mrb[0].mxu0
        %v478 = vadd.f32 %v377, %v477
        %v479 = vpop.f32.mrb[0].mxu0
        %480 = vdwg.mxu0
        %481 = vst [vmem:[%s215] sm:$0xff] %v451
        %482 = vst [vmem:[%s215 + $0x8] sm:$0xff] %v454
        %483 = vst [vmem:[%s215 + $0x10] sm:$0xff] %v459
        %484 = vst [vmem:[%s215 + $0x18] sm:$0xff] %v462
        %485 = vst [vmem:[%s215 + $0x20] sm:$0xff] %v467
        %486 = vst [vmem:[%s215 + $0x28] sm:$0xff] %v470
        %487 = vst [vmem:[%s215 + $0x30] sm:$0xff] %v475
        %488 = vst [vmem:[%s215 + $0x38] sm:$0xff] %v478
        %s489 = sand.u32 %s118, 1
        %s490 = scalar_lea.sflag [#allocation4], %s489
        %s491 = sand.u32 %s118, 1
        %s492 = smul.addr %s491, 64
        %s493 = scalar_lea.vmem [#allocation5], %s492
        // Predicated region
        $region41: #{tpu_custom_call.1} parent=35 // pred_check
          %p494 = pneg %p128
        $region42: #{tpu_custom_call.1} parent=35 // pred_check_branch
          %496 = sbr.rel (%p494) target = $region44
        $region43: #{tpu_custom_call.1} parent=35 // pred_region
          %s497 = smul.u32 8, %s21
          %s499 = ssub.s32 1024, 1024
          %500 = vsyncadd %s490, %s499
          %s501 = smul.addr %s497, 128
          %s502 = scalar_lea.hbm %s4, %s501
          %s503 = sshll.u32 %s493, 4
          %s504 = int_to_ptr.vmem [resolvable:$true] %s503
          %509 = dma.vmem_to_hbm [thread:$0]  %s504, 1024, %s502, %s490, 128, 128, 8
        $region44: #{tpu_custom_call.1} parent=35 // pred_fallthru
          _
      $region36: #{tpu_custom_call.1} parent=5 // pred_fallthru
        _
      %p510 = scmp.le.s32.totalorder 2, %s16
      // Predicated region
      $region45: #{tpu_custom_call.1} parent=5 // pred_check
        %p511 = pneg %p510
      $region46: #{tpu_custom_call.1} parent=5 // pred_check_branch
        %513 = sbr.rel (%p511) target = $region48
      $region47: #{tpu_custom_call.1} parent=5 // pred_region
        %s514 = ssub.s32 %s16, 2
        // Predicated region
        $region49: #{tpu_custom_call.1} parent=47 // pred_check
          %p515 = pneg %p134
        $region50: #{tpu_custom_call.1} parent=47 // pred_check_branch
          %517 = sbr.rel (%p515) target = $region52
        $region51: #{tpu_custom_call.1} parent=47 // pred_region
          %s518 = sand.u32 %s119, 1
          %s519 = scalar_lea.sflag [#allocation4], %s518
          %s520 = sand.u32 %s119, 1
          %s521 = smul.addr %s520, 64
          %s522 = scalar_lea.vmem [#allocation5], %s521
          %523 = dma.done %s519, 1024
        $region52: #{tpu_custom_call.1} parent=47 // pred_fallthru
          _
      $region48: #{tpu_custom_call.1} parent=5 // pred_fallthru
        _
    $region6: #{tpu_custom_call.1} parent=1 // loop_footer
      %s20 = sadd.s32 1, %s16
    $region7: #{tpu_custom_call.1} parent=1 // loop_footer_branch
      %15 = sbr.rel target = $region3
    $region8: #{tpu_custom_call.1} parent=1 // loop_exit
      _
    %524 = vsyncpa [#allocation3], 1
    %s525 = scalar_lea.sflag [#allocation3], 1
    %526 = vsyncpa %s525, 1
    %527 = vsyncpa [#allocation4], 1
    %s528 = scalar_lea.sflag [#allocation4], 1
    %529 = vsyncpa %s528, 1

// kernel: tpu_custom_call.1
$region0: #{tpu_custom_call.1}
  #allocation0 [shape = 'u32[]', space=smem, size = 0x4, offset = 0x4, fixed_abs, tag = 'smem constant byte address 0x4 - core index']
  #allocation1 [shape = 'u32[144,128]{1,0:T(1,128)}', space=vmem, size = 0x12000, scoped, tag = 'internal scratch']
  %s0 = inlined_call_operand.hbm [shape: f32[128,128], index: 0, kind: input, shape index: {}]
  %s1 = inlined_call_operand.vmem [shape: bf16[128,64], index: 1, kind: input, shape index: {}]
  %s2 = inlined_call_operand.vmem [shape: bf16[64,128], index: 2, kind: input, shape index: {}]
  %s3 = inlined_call_operand.vmem [shape: f32[1,128], index: 3, kind: input, shape index: {}]
  %s4 = inlined_call_operand.hbm [shape: f32[128,128], index: 4, kind: output, shape index: {}]
  %s5 = sld [smem:[#allocation0]]
  $region53: #{tpu_custom_call.1} parent=0
    _
  %s7 = ssub.s32 1, %s5
  %s8 = scalar_select 0, %s7, %s5
  $region1: #{tpu_custom_call.1} parent=0
    #allocation2 [shape = 'u8[65536]{0}', space=vmem, size = 0x10000, scoped, tag = 'input window, operand 0']
    #allocation3 [shape = 's32[2]{0}', space=sflag, size = 0x8, scoped, tag = 'scoped memory for tpu_custom_call.1']
    #allocation4 [shape = 's32[2]{0}', space=sflag, size = 0x8, scoped, tag = 'scoped memory for tpu_custom_call.1']
    #allocation5 [shape = 'u8[65536]{0}', space=vmem, size = 0x10000, scoped, tag = 'output window, operand 0']
    %9 = vsyncpa [#allocation3], 0
    %s10 = scalar_lea.sflag [#allocation3], 1
    %11 = vsyncpa %s10, 0
    %12 = vsyncpa [#allocation4], 0
    %s13 = scalar_lea.sflag [#allocation4], 1
    %14 = vsyncpa %s13, 0
    loop: start=0, step=1, limit=4
    $region2: #{tpu_custom_call.1} parent=1 // loop_pre_header
      _
    $region3: #{tpu_custom_call.1} parent=1 // loop_header
      %s16 = sphi 0, %s20
      %p17 = scmp.ge.s32.totalorder %s16, 4
      %s26 = sphi 0, %s28
      %s29 = sphi 0, %s26
      %s30 = sphi 0, %s29
      %s46 = sphi 0, %s30
      %s50 = sphi 0, %s50
      %s52 = sphi 0, %s50
      %s53 = sphi 0, %s52
      %s67 = sphi 0, %s53
      %s71 = sphi 0, %s71
      %s73 = sphi 0, %s71
      %s74 = sphi 0, %s73
      %s88 = sphi 0, %s74
      %s92 = sphi 0, %s92
      %s94 = sphi 0, %s92
      %s95 = sphi 0, %s94
      %s109 = sphi 0, %s95
      %s115 = sphi 0, %s117
      %s118 = sphi 0, %s115
      %s119 = sphi 0, %s118
      %s135 = sphi 0, %s119
    $region4: #{tpu_custom_call.1} parent=1 // loop_header_branch
      %19 = sbr.rel (%p17) target = $region8
    $region5: #{tpu_custom_call.1} parent=1 // loop_body
      %s21 = ssub.s32 %s16, 1
      %s22 = ssub.s32 %s16, 2
      %s23 = sadd.s32 %s16, 1
      %s24 = ssub.s32 %s16, %s23
      %p25 = scmp.eq.s32.totalorder %s24, 0
      %s27 = sadd.s32 %s26, 1
      %s28 = scalar_select %p25, %s26, %s27
      %p31 = pneg %p25
      %p32 = scmp.eq.s32.totalorder %s16, 1
      %p33 = por %p31, %p32
      %p34 = scmp.ne.s32.totalorder %s26, %s29
      %p35 = scmp.eq.s32.totalorder %s16, 0
      %p36 = por %p34, %p35
      %p37 = scmp.ne.s32.totalorder %s26, %s29
      %p38 = scmp.eq.s32.totalorder %s21, 1
      %p39 = por %p37, %p38
      %p40 = scmp.ne.s32.totalorder %s29, %s30
      %p41 = scmp.eq.s32.totalorder %s21, 0
      %p42 = por %p40, %p41
      %p43 = scmp.ne.s32.totalorder %s29, %s30
      %p44 = scmp.eq.s32.totalorder %s22, 1
      %p45 = por %p43, %p44
      %p47 = scmp.ne.s32.totalorder %s30, %s46
      %p48 = scmp.eq.s32.totalorder %s22, 0
      %p49 = por %p47, %p48
      %s51 = sadd.s32 %s50, 1
      %p54 = scmp.eq.s32.totalorder %s16, 1
      %p55 = scmp.ne.s32.totalorder %s50, %s52
      %p56 = scmp.eq.s32.totalorder %s16, 0
      %p57 = por %p55, %p56
      %p58 = scmp.ne.s32.totalorder %s50, %s52
      %p59 = scmp.eq.s32.totalorder %s21, 1
      %p60 = por %p58, %p59
      %p61 = scmp.ne.s32.totalorder %s52, %s53
      %p62 = scmp.eq.s32.totalorder %s21, 0
      %p63 = por %p61, %p62
      %p64 = scmp.ne.s32.totalorder %s52, %s53
      %p65 = scmp.eq.s32.totalorder %s22, 1
      %p66 = por %p64, %p65
      %p68 = scmp.ne.s32.totalorder %s53, %s67
      %p69 = scmp.eq.s32.totalorder %s22, 0
      %p70 = por %p68, %p69
      %s72 = sadd.s32 %s71, 1
      %p75 = scmp.eq.s32.totalorder %s16, 1
      %p76 = scmp.ne.s32.totalorder %s71, %s73
      %p77 = scmp.eq.s32.totalorder %s16, 0
      %p78 = por %p76, %p77
      %p79 = scmp.ne.s32.totalorder %s71, %s73
      %p80 = scmp.eq.s32.totalorder %s21, 1
      %p81 = por %p79, %p80
      %p82 = scmp.ne.s32.totalorder %s73, %s74
      %p83 = scmp.eq.s32.totalorder %s21, 0
      %p84 = por %p82, %p83
      %p85 = scmp.ne.s32.totalorder %s73, %s74
      %p86 = scmp.eq.s32.totalorder %s22, 1
      %p87 = por %p85, %p86
      %p89 = scmp.ne.s32.totalorder %s74, %s88
      %p90 = scmp.eq.s32.totalorder %s22, 0
      %p91 = por %p89, %p90
      %s93 = sadd.s32 %s92, 1
      %p96 = scmp.eq.s32.totalorder %s16, 1
      %p97 = scmp.ne.s32.totalorder %s92, %s94
      %p98 = scmp.eq.s32.totalorder %s16, 0
      %p99 = por %p97, %p98
      %p100 = scmp.ne.s32.totalorder %s92, %s94
      %p101 = scmp.eq.s32.totalorder %s21, 1
      %p102 = por %p100, %p101
      %p103 = scmp.ne.s32.totalorder %s94, %s95
      %p104 = scmp.eq.s32.totalorder %s21, 0
      %p105 = por %p103, %p104
      %p106 = scmp.ne.s32.totalorder %s94, %s95
      %p107 = scmp.eq.s32.totalorder %s22, 1
      %p108 = por %p106, %p107
      %p110 = scmp.ne.s32.totalorder %s95, %s109
      %p111 = scmp.eq.s32.totalorder %s22, 0
      %p112 = por %p110, %p111
      %s113 = ssub.s32 %s16, %s23
      %p114 = scmp.eq.s32.totalorder %s113, 0
      %s116 = sadd.s32 %s115, 1
      %s117 = scalar_select %p114, %s115, %s116
      %p120 = pneg %p114
      %p121 = scmp.eq.s32.totalorder %s16, 1
      %p122 = por %p120, %p121
      %p123 = scmp.ne.s32.totalorder %s115, %s118
      %p124 = scmp.eq.s32.totalorder %s16, 0
      %p125 = por %p123, %p124
      %p126 = scmp.ne.s32.totalorder %s115, %s118
      %p127 = scmp.eq.s32.totalorder %s21, 1
      %p128 = por %p126, %p127
      %p129 = scmp.ne.s32.totalorder %s118, %s119
      %p130 = scmp.eq.s32.totalorder %s21, 0
      %p131 = por %p129, %p130
      %p132 = scmp.ne.s32.totalorder %s118, %s119
      %p133 = scmp.eq.s32.totalorder %s22, 1
      %p134 = por %p132, %p133
      %p136 = scmp.ne.s32.totalorder %s119, %s135
      %p137 = scmp.eq.s32.totalorder %s22, 0
      %p138 = por %p136, %p137
      %p139 = scmp.le.s32.totalorder 1, %s16
      %p140 = scmp.lt.s32.totalorder %s16, 3
      %p141 = pnand %p139, %p140
      %p142 = pneg %p141
      // Predicated region
      $region9: #{tpu_custom_call.1} parent=5 // pred_check
        _
      $region10: #{tpu_custom_call.1} parent=5 // pred_check_branch
        %144 = sbr.rel (%p141) target = $region12
      $region11: #{tpu_custom_call.1} parent=5 // pred_region
        %s145 = ssub.s32 %s16, 1
        // Predicated region
        $region13: #{tpu_custom_call.1} parent=11 // pred_check
          %p146 = pneg %p63
        $region14: #{tpu_custom_call.1} parent=11 // pred_check_branch
          %148 = sbr.rel (%p146) target = $region16
        $region15: #{tpu_custom_call.1} parent=11 // pred_region
          _
        $region16: #{tpu_custom_call.1} parent=11 // pred_fallthru
          _
        // Predicated region
        $region17: #{tpu_custom_call.1} parent=11 // pred_check
          %p149 = pneg %p84
        $region18: #{tpu_custom_call.1} parent=11 // pred_check_branch
          %151 = sbr.rel (%p149) target = $region20
        $region19: #{tpu_custom_call.1} parent=11 // pred_region
          _
        $region20: #{tpu_custom_call.1} parent=11 // pred_fallthru
          _
        // Predicated region
        $region21: #{tpu_custom_call.1} parent=11 // pred_check
          %p152 = pneg %p105
        $region22: #{tpu_custom_call.1} parent=11 // pred_check_branch
          %154 = sbr.rel (%p152) target = $region24
        $region23: #{tpu_custom_call.1} parent=11 // pred_region
          _
        $region24: #{tpu_custom_call.1} parent=11 // pred_fallthru
          _
      $region12: #{tpu_custom_call.1} parent=5 // pred_fallthru
        _
      %p155 = scmp.lt.s32.totalorder %s16, 2
      // Predicated region
      $region25: #{tpu_custom_call.1} parent=5 // pred_check
        %p156 = pneg %p155
      $region26: #{tpu_custom_call.1} parent=5 // pred_check_branch
        %158 = sbr.rel (%p156) target = $region28
      $region27: #{tpu_custom_call.1} parent=5 // pred_region
        // Predicated region
        $region29: #{tpu_custom_call.1} parent=27 // pred_check
          %p159 = pneg %p36
        $region30: #{tpu_custom_call.1} parent=27 // pred_check_branch
          %161 = sbr.rel (%p159) target = $region32
        $region31: #{tpu_custom_call.1} parent=27 // pred_region
          %s162 = sand.u32 %s26, 1
          %s163 = scalar_lea.sflag [#allocation3], %s162
          %s164 = sand.u32 %s26, 1
          %s165 = smul.addr %s164, 64
          %s166 = scalar_lea.vmem [#allocation2], %s165
          %s167 = smul.u32 8, %s16
          %s169 = ssub.s32 1024, 1024
          %170 = vsyncadd %s163, %s169
          %s171 = smul.addr %s167, 128
          %s172 = scalar_lea.hbm %s0, %s171
          %s173 = sshll.u32 %s166, 4
          %s174 = int_to_ptr.vmem [resolvable:$true] %s173
          %179 = dma.hbm_to_vmem [thread:$0]  %s172, 1024, %s174, %s163, 128, 128, 8
        $region32: #{tpu_custom_call.1} parent=27 // pred_fallthru
          _
      $region28: #{tpu_custom_call.1} parent=5 // pred_fallthru
        _
      %p180 = scmp.le.s32.totalorder 1, %s16
      %p181 = scmp.lt.s32.totalorder %s16, 3
      %p182 = pnand %p180, %p181
      %p183 = pneg %p182
      // Predicated region
      $region33: #{tpu_custom_call.1} parent=5 // pred_check
        _
      $region34: #{tpu_custom_call.1} parent=5 // pred_check_branch
        %185 = sbr.rel (%p182) target = $region36
      $region35: #{tpu_custom_call.1} parent=5 // pred_region
        %s186 = ssub.s32 %s16, 1
        %s187 = sand.u32 %s29, 1
        %s188 = scalar_lea.sflag [#allocation3], %s187
        %s189 = sand.u32 %s29, 1
        %s190 = smul.addr %s189, 64
        %s191 = scalar_lea.vmem [#allocation2], %s190
        // Predicated region
        $region37: #{tpu_custom_call.1} parent=35 // pred_check
          %p192 = pneg %p42
        $region38: #{tpu_custom_call.1} parent=35 // pred_check_branch
          %194 = sbr.rel (%p192) target = $region40
        $region39: #{tpu_custom_call.1} parent=35 // pred_region
          %195 = dma.done %s188, 1024
        $region40: #{tpu_custom_call.1} parent=35 // pred_fallthru
          _
        %s196 = sand.u32 %s29, 1
        %s197 = scalar_lea.sflag [#allocation3], %s196
        %s198 = sand.u32 %s29, 1
        %s199 = smul.addr %s198, 64
        %s200 = scalar_lea.vmem [#allocation2], %s199
        %p201 = pneg %p42
        %p202 = pneg %p39
        %p203 = pneg %p63
        %p204 = pneg %p60
        %p205 = pneg %p84
        %p206 = pneg %p81
        %p207 = pneg %p105
        %p208 = pneg %p102
        %p209 = pneg %p131
        %p210 = pneg %p128
        %s211 = sand.u32 %s118, 1
        %s212 = scalar_lea.sflag [#allocation4], %s211
        %s213 = sand.u32 %s118, 1
        %s214 = smul.addr %s213, 64
        %s215 = scalar_lea.vmem [#allocation5], %s214
        %s216 = smul.u32 8, %s21
        %s217 = smul.u32 8, %s21
        %v219 = vld [vmem:[%s191] sm:$0xff]
        %v220 = vld [vmem:[%s191 + $0x8] sm:$0xff]
        %v221 = vld [vmem:[%s191 + $0x10] sm:$0xff]
        %v222 = vld [vmem:[%s191 + $0x18] sm:$0xff]
        %v223 = vld [vmem:[%s191 + $0x20] sm:$0xff]
        %v224 = vld [vmem:[%s191 + $0x28] sm:$0xff]
        %v225 = vld [vmem:[%s191 + $0x30] sm:$0xff]
        %v226 = vld [vmem:[%s191 + $0x38] sm:$0xff]
        %v227 = vpack.c.bf16 %v220, %v219
        %v228 = vpack.c.bf16 %v222, %v221
        %v229 = vpack.c.bf16 %v224, %v223
        %v230 = vpack.c.bf16 %v226, %v225
        %v231 = vld [vmem:[%s1] sm:$0xf]
        %v232 = vld [vmem:[%s1 + $0x4] sm:$0xf]
        %v233 = vld [vmem:[%s1 + $0x8] sm:$0xf]
        %v234 = vld [vmem:[%s1 + $0xc] sm:$0xf]
        %v235 = vld [vmem:[%s1 + $0x10] sm:$0xf]
        %v236 = vld [vmem:[%s1 + $0x14] sm:$0xf]
        %v237 = vld [vmem:[%s1 + $0x18] sm:$0xf]
        %v238 = vld [vmem:[%s1 + $0x1c] sm:$0xf]
        %v239 = vld [vmem:[%s1 + $0x20] sm:$0xf]
        %v240 = vld [vmem:[%s1 + $0x24] sm:$0xf]
        %v241 = vld [vmem:[%s1 + $0x28] sm:$0xf]
        %v242 = vld [vmem:[%s1 + $0x2c] sm:$0xf]
        %v243 = vld [vmem:[%s1 + $0x30] sm:$0xf]
        %v244 = vld [vmem:[%s1 + $0x34] sm:$0xf]
        %v245 = vld [vmem:[%s1 + $0x38] sm:$0xf]
        %v246 = vld [vmem:[%s1 + $0x3c] sm:$0xf]
        %v263 = vunpack.c.l.b16 %v231
        %v264 = vunpack.c.l.b16 %v232
        %v265 = vunpack.c.l.b16 %v233
        %v266 = vunpack.c.l.b16 %v234
        %v267 = vunpack.c.l.b16 %v235
        %v268 = vunpack.c.l.b16 %v236
        %v269 = vunpack.c.l.b16 %v237
        %v270 = vunpack.c.l.b16 %v238
        %v271 = vunpack.c.l.b16 %v239
        %v272 = vunpack.c.l.b16 %v240
        %v273 = vunpack.c.l.b16 %v241
        %v274 = vunpack.c.l.b16 %v242
        %v275 = vunpack.c.l.b16 %v243
        %v276 = vunpack.c.l.b16 %v244
        %v277 = vunpack.c.l.b16 %v245
        %v278 = vunpack.c.l.b16 %v246
        %v279 = vpack.c.b16 %v264, %v263
        %v280 = vpack.c.b16 %v266, %v265
        %v281 = vpack.c.b16 %v268, %v267
        %v282 = vpack.c.b16 %v270, %v269
        %v283 = vpack.c.b16 %v272, %v271
        %v284 = vpack.c.b16 %v274, %v273
        %v285 = vpack.c.b16 %v276, %v275
        %v286 = vpack.c.b16 %v278, %v277
        %295 = vmatprep.subr.bf16.mxu0 0
        %296 = vmatpush1.bf16.msra.mxu0 %v279
        %297 = vmatprep.subr.bf16.mxu0 0
        %298 = vmatpush1.bf16.msra.mxu0 %v280
        %299 = vmatprep.subr.bf16.mxu0 0
        %300 = vmatpush1.bf16.msra.mxu0 %v281
        %301 = vmatprep.subr.bf16.mxu0 0
        %302 = vmatpush1.bf16.msra.mxu0 %v282
        %303 = vmatprep.subr.bf16.mxu0 0
        %304 = vmatpush1.bf16.msra.mxu0 %v283
        %305 = vmatprep.subr.bf16.mxu0 0
        %306 = vmatpush1.bf16.msra.mxu0 %v284
        %307 = vmatprep.subr.bf16.mxu0 0
        %308 = vmatpush1.bf16.msra.mxu0 %v285
        %309 = vmatprep.subr.bf16.mxu0 0
        %310 = vmatpush1.bf16.msra.mxu0 %v286
        %311 = vmatprep.subr.bf16.mxu0 0
        %312 = vmatpush1.bf16.msra.mxu0 0
        %313 = vmatprep.subr.bf16.mxu0 0
        %314 = vmatpush1.bf16.msra.mxu0 0
        %315 = vmatprep.subr.bf16.mxu0 0
        %316 = vmatpush1.bf16.msra.mxu0 0
        %317 = vmatprep.subr.bf16.mxu0 0
        %318 = vmatpush1.bf16.msra.mxu0 0
        %319 = vmatprep.subr.bf16.mxu0 0
        %320 = vmatpush1.bf16.msra.mxu0 0
        %321 = vmatprep.subr.bf16.mxu0 0
        %322 = vmatpush1.bf16.msra.mxu0 0
        %323 = vmatprep.subr.bf16.mxu0 0
        %324 = vmatpush1.bf16.msra.mxu0 0
        %325 = vmatprep.subr.bf16.mxu0 0
        %326 = vmatpush1.bf16.msra.mxu0 0
        %327 = vmatprep.mubr.bf16.mxu0 0
        %328 = vmatmul.mubr.bf16.gmra.mrb[0].mxu0 %v227
        %v329 = vpop.f32.mrb[0].mxu0
        %v330 = vadd.f32 0.0, %v329
        %v331 = vpop.f32.mrb[0].mxu0
        %v332 = vpop.f32.mrb[0].mxu0
        %v333 = vadd.f32 0.0, %v332
        %v334 = vpop.f32.mrb[0].mxu0
        %335 = vmatprep.mubr.bf16.mxu0 0
        %336 = vmatmul.mubr.bf16.gmra.mrb[0].mxu0 %v228
        %v337 = vpop.f32.mrb[0].mxu0
        %v338 = vadd.f32 0.0, %v337
        %v339 = vpop.f32.mrb[0].mxu0
        %v340 = vpop.f32.mrb[0].mxu0
        %v341 = vadd.f32 0.0, %v340
        %v342 = vpop.f32.mrb[0].mxu0
        %343 = vmatprep.mubr.bf16.mxu0 0
        %344 = vmatmul.mubr.bf16.gmra.mrb[0].mxu0 %v229
        %v345 = vpop.f32.mrb[0].mxu0
        %v346 = vadd.f32 0.0, %v345
        %v347 = vpop.f32.mrb[0].mxu0
        %v348 = vpop.f32.mrb[0].mxu0
        %v349 = vadd.f32 0.0, %v348
        %v350 = vpop.f32.mrb[0].mxu0
        %351 = vmatprep.mubr.bf16.mxu0 0
        %352 = vmatmul.mubr.bf16.gmra.mrb[0].mxu0 %v230
        %v353 = vpop.f32.mrb[0].mxu0
        %v354 = vadd.f32 0.0, %v353
        %v355 = vpop.f32.mrb[0].mxu0
        %v356 = vpop.f32.mrb[0].mxu0
        %v357 = vadd.f32 0.0, %v356
        %v358 = vpop.f32.mrb[0].mxu0
        %359 = vdwg.mxu0
        %v360 = vpack.c.bf16 %v333, %v330
        %v361 = vpack.c.bf16 %v341, %v338
        %v362 = vpack.c.bf16 %v349, %v346
        %v363 = vpack.c.bf16 %v357, %v354
        %v364 = vld [vmem:[%s2] sm:$0xf]
        %v365 = vld [vmem:[%s2 + $0x4] sm:$0xf]
        %v366 = vld [vmem:[%s2 + $0x8] sm:$0xf]
        %v367 = vld [vmem:[%s2 + $0xc] sm:$0xf]
        %v368 = vld [vmem:[%s2 + $0x10] sm:$0xf]
        %v369 = vld [vmem:[%s2 + $0x14] sm:$0xf]
        %v370 = vld [vmem:[%s2 + $0x18] sm:$0xf]
        %v371 = vld [vmem:[%s2 + $0x1c] sm:$0xf]
        %v372 = vld [vmem:[%s3] sm:$0x1]
        %v374 = vlaneseq
        %v375 = vshrl.u32 %v374, 7
        %v376 = vsub.s32 0, %v375
        %v377 = vrot.slane %v372, %v376
        %v387 = vunpack.c.l.b16 %v364
        %v388 = vunpack.c.l.b16 %v365
        %v389 = vunpack.c.l.b16 %v366
        %v390 = vunpack.c.l.b16 %v367
        %v391 = vunpack.c.l.b16 %v368
        %v392 = vunpack.c.l.b16 %v369
        %v393 = vunpack.c.l.b16 %v370
        %v394 = vunpack.c.l.b16 %v371
        %v395 = vpack.c.b16 %v388, %v387
        %v396 = vpack.c.b16 %v390, %v389
        %v397 = vpack.c.b16 %v392, %v391
        %v398 = vpack.c.b16 %v394, %v393
        %vm403 = vcmask 523264
        %v405 = vsel %vm403, %v360, 0
        %v408 = vsel %vm403, %v361, 0
        %v411 = vsel %vm403, %v362, 0
        %v414 = vsel %vm403, %v363, 0
        %416 = vmatprep.subr.bf16.mxu0 0
        %417 = vmatpush1.bf16.msra.mxu0 %v395
        %418 = vmatprep.subr.bf16.mxu0 0
        %419 = vmatpush1.bf16.msra.mxu0 %v396
        %420 = vmatprep.subr.bf16.mxu0 0
        %421 = vmatpush1.bf16.msra.mxu0 %v397
        %422 = vmatprep.subr.bf16.mxu0 0
        %423 = vmatpush1.bf16.msra.mxu0 %v398
        %424 = vmatprep.subr.bf16.mxu0 0
        %425 = vmatpush1.bf16.msra.mxu0 0
        %426 = vmatprep.subr.bf16.mxu0 0
        %427 = vmatpush1.bf16.msra.mxu0 0
        %428 = vmatprep.subr.bf16.mxu0 0
        %429 = vmatpush1.bf16.msra.mxu0 0
        %430 = vmatprep.subr.bf16.mxu0 0
        %431 = vmatpush1.bf16.msra.mxu0 0
        %432 = vmatprep.subr.bf16.mxu0 0
        %433 = vmatpush1.bf16.msra.mxu0 0
        %434 = vmatprep.subr.bf16.mxu0 0
        %435 = vmatpush1.bf16.msra.mxu0 0
        %436 = vmatprep.subr.bf16.mxu0 0
        %437 = vmatpush1.bf16.msra.mxu0 0
        %438 = vmatprep.subr.bf16.mxu0 0
        %439 = vmatpush1.bf16.msra.mxu0 0
        %440 = vmatprep.subr.bf16.mxu0 0
        %441 = vmatpush1.bf16.msra.mxu0 0
        %442 = vmatprep.subr.bf16.mxu0 0
        %443 = vmatpush1.bf16.msra.mxu0 0
        %444 = vmatprep.subr.bf16.mxu0 0
        %445 = vmatpush1.bf16.msra.mxu0 0
        %446 = vmatprep.subr.bf16.mxu0 0
        %447 = vmatpush1.bf16.msra.mxu0 0
        %448 = vmatprep.mubr.bf16.mxu0 0
        %449 = vmatmul.mubr.bf16.gmra.mrb[0].mxu0 %v405
        %v450 = vpop.f32.mrb[0].mxu0
        %v451 = vadd.f32 %v377, %v450
        %v452 = vpop.f32.mrb[0].mxu0
        %v453 = vpop.f32.mrb[0].mxu0
        %v454 = vadd.f32 %v377, %v453
        %v455 = vpop.f32.mrb[0].mxu0
        %456 = vmatprep.mubr.bf16.mxu0 0
        %457 = vmatmul.mubr.bf16.gmra.mrb[0].mxu0 %v408
        %v458 = vpop.f32.mrb[0].mxu0
        %v459 = vadd.f32 %v377, %v458
        %v460 = vpop.f32.mrb[0].mxu0
        %v461 = vpop.f32.mrb[0].mxu0
        %v462 = vadd.f32 %v377, %v461
        %v463 = vpop.f32.mrb[0].mxu0
        %464 = vmatprep.mubr.bf16.mxu0 0
        %465 = vmatmul.mubr.bf16.gmra.mrb[0].mxu0 %v411
        %v466 = vpop.f32.mrb[0].mxu0
        %v467 = vadd.f32 %v377, %v466
        %v468 = vpop.f32.mrb[0].mxu0
        %v469 = vpop.f32.mrb[0].mxu0
        %v470 = vadd.f32 %v377, %v469
        %v471 = vpop.f32.mrb[0].mxu0
        %472 = vmatprep.mubr.bf16.mxu0 0
        %473 = vmatmul.mubr.bf16.gmra.mrb[0].mxu0 %v414
        %v474 = vpop.f32.mrb[0].mxu0
        %v475 = vadd.f32 %v377, %v474
        %v476 = vpop.f32.mrb[0].mxu0
        %v477 = vpop.f32.mrb[0].mxu0
        %v478 = vadd.f32 %v377, %v477
        %v479 = vpop.f32.mrb[0].mxu0
        %480 = vdwg.mxu0
        %481 = vst [vmem:[%s215] sm:$0xff] %v451
        %482 = vst [vmem:[%s215 + $0x8] sm:$0xff] %v454
        %483 = vst [vmem:[%s215 + $0x10] sm:$0xff] %v459
        %484 = vst [vmem:[%s215 + $0x18] sm:$0xff] %v462
        %485 = vst [vmem:[%s215 + $0x20] sm:$0xff] %v467
        %486 = vst [vmem:[%s215 + $0x28] sm:$0xff] %v470
        %487 = vst [vmem:[%s215 + $0x30] sm:$0xff] %v475
        %488 = vst [vmem:[%s215 + $0x38] sm:$0xff] %v478
        %s489 = sand.u32 %s118, 1
        %s490 = scalar_lea.sflag [#allocation4], %s489
        %s491 = sand.u32 %s118, 1
        %s492 = smul.addr %s491, 64
        %s493 = scalar_lea.vmem [#allocation5], %s492
        // Predicated region
        $region41: #{tpu_custom_call.1} parent=35 // pred_check
          %p494 = pneg %p128
        $region42: #{tpu_custom_call.1} parent=35 // pred_check_branch
          %496 = sbr.rel (%p494) target = $region44
        $region43: #{tpu_custom_call.1} parent=35 // pred_region
          %s497 = smul.u32 8, %s21
          %s499 = ssub.s32 1024, 1024
          %500 = vsyncadd %s490, %s499
          %s501 = smul.addr %s497, 128
          %s502 = scalar_lea.hbm %s4, %s501
          %s503 = sshll.u32 %s493, 4
          %s504 = int_to_ptr.vmem [resolvable:$true] %s503
          %509 = dma.vmem_to_hbm [thread:$0]  %s504, 1024, %s502, %s490, 128, 128, 8
        $region44: #{tpu_custom_call.1} parent=35 // pred_fallthru
          _
      $region36: #{tpu_custom_call.1} parent=5 // pred_fallthru
        _
      %p510 = scmp.le.s32.totalorder 2, %s16
      // Predicated region
      $region45: #{tpu_custom_call.1} parent=5 // pred_check
        %p511 = pneg %p510
      $region46: #{tpu_custom_call.1} parent=5 // pred_check_branch
        %513 = sbr.rel (%p511) target = $region48
      $region47: #{tpu_custom_call.1} parent=5 // pred_region
        %s514 = ssub.s32 %s16, 2
        // Predicated region
        $region49: #{tpu_custom_call.1} parent=47 // pred_check
          %p515 = pneg %p134
        $region50: #{tpu_custom_call.1} parent=47 // pred_check_branch
          %517 = sbr.rel (%p515) target = $region52
        $region51: #{tpu_custom_call.1} parent=47 // pred_region
          %s518 = sand.u32 %s119, 1
          %s519 = scalar_lea.sflag [#allocation4], %s518
          %s520 = sand.u32 %s119, 1
          %s521 = smul.addr %s520, 64
          %s522 = scalar_lea.vmem [#allocation5], %s521
          %523 = dma.done %s519, 1024
        $region52: #{tpu_custom_call.1} parent=47 // pred_fallthru
          _
      $region48: #{tpu_custom_call.1} parent=5 // pred_fallthru
        _
    $region6: #{tpu_custom_call.1} parent=1 // loop_footer
      %s20 = sadd.s32 1, %s16
    $region7: #{tpu_custom_call.1} parent=1 // loop_footer_branch
      %15 = sbr.rel target = $region3
    $region8: #{tpu_custom_call.1} parent=1 // loop_exit
      _
    %524 = vsyncpa [#allocation3], 1
    %s525 = scalar_lea.sflag [#allocation3], 1
    %526 = vsyncpa %s525, 1
    %527 = vsyncpa [#allocation4], 1
    %s528 = scalar_lea.sflag [#allocation4], 1
    %529 = vsyncpa %s528, 1

</llo_original>
